<compile_context>
chip_gen: v7x
topology: tpu7x:2x2x1
jax: 0.10.0
libtpu: 0.0.40
codegen_flags: <defaults>
</compile_context>

<pallas_src>
import functools

import jax
import jax.numpy as jnp
from jax.experimental import pallas as pl
from jax.experimental.pallas import tpu as pltpu

IN_DIM = 8
MID_DIMS = (6, 4)
OUT_DIM = 1

_PARAM_LANES = 128  # one (8, 128) f32 tile holds every weight and bias


def _round_up(n, m):
    return (n + m - 1) // m * m


def pack_params(params):
    """Pack (w1, b1, w2, b2, w3, b3) into a single zero-padded (8, 128) tile.

    Column layout (all unset entries are zero):
      [:,  0: 8]  W1^T (6, 8)  rows 0..5
      [:, 24]     b1   (6,)    rows 0..5               (explicit bias add)
      [:,  8:14]  W2^T (4, 6)  rows 0..3
      [:, 14]     2*b2 (4,)    rows 0..3   <- h1 row 6 is exactly 0.5
      [:, 16:20]  W3^T (1, 4)  row 0
      [:, 20]     2*b3 (1,)    row 0       <- h2 row 4 is exactly 0.5

    The zero padding is load-bearing: padded activation sublanes become
    sigmoid(0)=0.5, and the ONLY non-zero weight they ever meet is the folded
    2*b term, which is exactly the intended bias.
    """
    w1, b1, w2, b2, w3, b3 = params
    p = jnp.zeros((IN_DIM, _PARAM_LANES), jnp.float32)
    # Layer 1.
    p = p.at[0:MID_DIMS[0], 0:IN_DIM].set(w1.T.astype(jnp.float32))
    p = p.at[0:MID_DIMS[0], 24].set(b1.reshape(-1).astype(jnp.float32))
    # Layer 2 (bias folded).
    p = p.at[0:MID_DIMS[1], 8:8 + MID_DIMS[0]].set(w2.T.astype(jnp.float32))
    p = p.at[0:MID_DIMS[1], 14].set(2.0 * b2.reshape(-1).astype(jnp.float32))
    # Layer 3 (bias folded).
    p = p.at[0:OUT_DIM, 16:16 + MID_DIMS[1]].set(w3.T.astype(jnp.float32))
    p = p.at[0:OUT_DIM, 20].set(2.0 * b3.reshape(-1).astype(jnp.float32))
    return p


def _sigmoid_one_eup(z):
    """sigmoid(z) as a single EUP transcendental (tanh), exact at z=0 -> 0.5."""
    return 0.5 * (jnp.tanh(0.5 * z) + 1.0)


def _mlp_kernel(x_ref, p_ref, o_ref):
    """Fused 3x (Linear + Sigmoid), batch on the lane axis.

    x_ref: (8, TILE_B) f32    p_ref: (8, 128) f32    o_ref: (1, TILE_B) f32
    """
    x = x_ref[...]                               # (8, TILE_B)

    # Static slices of the VMEM-resident packed parameter tile.
    w1t = p_ref[:, 0:8]                          # (8, 8)  rows 6..7 zero
    b1 = p_ref[:, 24:25]                         # (8, 1)  rows 6..7 zero
    w2t = p_ref[:, 8:16]                         # (8, 8)  col 14 carries 2*b2
    w3t = p_ref[0:1, 16:24]                      # (1, 8)  col 20 carries 2*b3

    # Layer 1: (8,8)@(8,B) + b1 -> (8,B); rows 6..7 are exactly 0.5 after act.
    h1 = _sigmoid_one_eup(
        jnp.dot(w1t, x, preferred_element_type=jnp.float32) + b1)
    # Layer 2: bias arrives via (0.5 * 2*b2) from h1 row 6; rows 4..7 -> 0.5.
    h2 = _sigmoid_one_eup(
        jnp.dot(w2t, h1, preferred_element_type=jnp.float32))
    # Layer 3: bias arrives via (0.5 * 2*b3) from h2 row 4; lane-dense row out.
    z3 = jnp.dot(w3t, h2, preferred_element_type=jnp.float32)
    o_ref[...] = _sigmoid_one_eup(z3).astype(o_ref.dtype)


def _pick_tile_b(batch, max_tile_b):
    """128-aligned batch tile: big enough to amortize the ~0.35us/step pipeline
    overhead, small enough to fit the default scoped VMEM on every generation,
    and (when the batch allows it) giving >= 4 grid steps so the "parallel"
    axis keeps both v7x TensorCores busy."""
    b128 = _round_up(batch, 128)
    quarter = _round_up(pl.cdiv(b128, 4), 128)   # aim for >= 4 grid steps
    return max(128, min(max_tile_b, b128, quarter))


@functools.partial(jax.jit, static_argnames=("max_tile_b",))
def multi_dim_forward(x, params, *, max_tile_b=32768):
    """Forward pass matching the PyTorch module: x (B, 8) f32 -> (B, 1) f32."""
    batch = x.shape[0]
    # Robustness: the lane axis of every block must be a multiple of 128.
    max_tile_b = _round_up(max(int(max_tile_b), 128), 128)

    packed = pack_params(params)
    tile_b = _pick_tile_b(batch, max_tile_b)
    b_pad = _round_up(batch, tile_b)

    # Single fused transpose+pad pass: features on sublanes, batch on lanes.
    # (Zero-padded lanes keep the discarded tail finite; they are sliced off.)
    x_t = jnp.pad(x.astype(jnp.float32).T, ((0, 0), (0, b_pad - batch)))

    out = pl.pallas_call(
        _mlp_kernel,
        out_shape=jax.ShapeDtypeStruct((OUT_DIM, b_pad), jnp.float32),
        grid=(b_pad // tile_b,),
        in_specs=[
            pl.BlockSpec((IN_DIM, tile_b), lambda i: (0, i)),
            # Same block every grid step -> packed params stay VMEM-resident.
            pl.BlockSpec((IN_DIM, _PARAM_LANES), lambda i: (0, 0)),
        ],
        out_specs=pl.BlockSpec((OUT_DIM, tile_b), lambda i: (0, i)),
        compiler_params=pltpu.CompilerParams(
            dimension_semantics=("parallel",)),
    )(x_t, packed)

    return out[:, :batch].T                      # back to (B, 1) PyTorch layout


def init_params(key):
    """Deterministic init mimicking nn.Linear's U(-1/sqrt(fan_in), +1/sqrt(fan_in))."""
    dims = [IN_DIM, MID_DIMS[0], MID_DIMS[1], OUT_DIM]
    params = []
    for i in range(3):
        fan_in, fan_out = dims[i], dims[i + 1]
        key, kw, kb = jax.random.split(key, 3)
        bound = 1.0 / jnp.sqrt(float(fan_in))
        w = jax.random.uniform(kw, (fan_in, fan_out), jnp.float32, -bound, bound)
        b = jax.random.uniform(kb, (1, fan_out), jnp.float32, -bound, bound)
        params += [w, b]
    return tuple(params)


def reference_forward(x, params):
    """Pure-JAX reference for correctness checking."""
    w1, b1, w2, b2, w3, b3 = params
    h = jax.nn.sigmoid(x @ w1 + b1)
    h = jax.nn.sigmoid(h @ w2 + b2)
    return jax.nn.sigmoid(h @ w3 + b3)


if __name__ == "__main__":
    key = jax.random.PRNGKey(0)
    key, kx = jax.random.split(key)
    params = init_params(key)

    # Primary small-shape check (batch=8): single grid step.
    x_small = jax.random.normal(kx, (8, IN_DIM), dtype=jnp.float32)
    out_small = jax.block_until_ready(multi_dim_forward(x_small, params))
    ref_small = reference_forward(x_small, params)
    assert out_small.shape == (8, OUT_DIM)
    assert jnp.allclose(out_small, ref_small, atol=1e-5, rtol=1e-5), \
        "mismatch vs reference (batch=8)"

    # Multi-block ragged batch: exercises the pad/slice path and a 3-step grid.
    key, kx2 = jax.random.split(key)
    x_med = jax.random.normal(kx2, (300, IN_DIM), dtype=jnp.float32)
    out_med = jax.block_until_ready(
        multi_dim_forward(x_med, params, max_tile_b=128))
    ref_med = reference_forward(x_med, params)
    assert out_med.shape == (300, OUT_DIM)
    assert jnp.allclose(out_med, ref_med, atol=1e-5, rtol=1e-5), \
        "mismatch vs reference (batch=300, tiled)"

    # Default tile picker: batch=2048 -> tile_b=512, 4 grid steps (megacore path).
    key, kx3 = jax.random.split(key)
    x_big = jax.random.normal(kx3, (2048, IN_DIM), dtype=jnp.float32)
    out_big = jax.block_until_ready(multi_dim_forward(x_big, params))
    ref_big = reference_forward(x_big, params)
    assert out_big.shape == (2048, OUT_DIM)
    assert jnp.allclose(out_big, ref_big, atol=1e-5, rtol=1e-5), \
        "mismatch vs reference (batch=2048, default tiling)"

    print("KERNEL_OK")
</pallas_src>

<mosaic_0001>
module attributes {stable_mosaic.version = 11 : i64} {
  func.func @_mlp_kernel(%arg0: i32, %arg1: memref<8x128xf32, #tpu.memory_space<vmem>>, %arg2: memref<8x128xf32, #tpu.memory_space<vmem>>, %arg3: memref<1x128xf32, #tpu.memory_space<vmem>>) attributes {dimension_semantics = [#tpu.dimension_semantics<parallel>], iteration_bounds = array<i64: 1>, scalar_prefetch = 0 : i64, scratch_operands = 0 : i64, tpu.core_type = #tpu.core_type<tc>, window_params = [{transform_indices = @transform_0, window_bounds = array<i64: 8, 128>}, {pipeline_mode = #tpu.pipeline_mode<synchronous>, transform_indices = @transform_1, window_bounds = array<i64: 8, 128>}, {transform_indices = @transform_2, window_bounds = array<i64: 1, 128>}]} {
    %c0 = arith.constant 0 : index
    %c0_0 = arith.constant 0 : index
    %0 = vector.load %arg1[%c0, %c0_0] : memref<8x128xf32, #tpu.memory_space<vmem>>, vector<8x128xf32>
    %c0_1 = arith.constant 0 : index
    %c0_2 = arith.constant 0 : index
    %1 = vector.load %arg2[%c0_1, %c0_2] : memref<8x128xf32, #tpu.memory_space<vmem>>, vector<8x8xf32>
    %c0_3 = arith.constant 0 : index
    %c24 = arith.constant 24 : index
    %2 = vector.load %arg2[%c0_3, %c24] : memref<8x128xf32, #tpu.memory_space<vmem>>, vector<8x1xf32>
    %c0_4 = arith.constant 0 : index
    %c8 = arith.constant 8 : index
    %3 = vector.load %arg2[%c0_4, %c8] : memref<8x128xf32, #tpu.memory_space<vmem>>, vector<8x8xf32>
    %c0_5 = arith.constant 0 : index
    %c16 = arith.constant 16 : index
    %4 = vector.load %arg2[%c0_5, %c16] : memref<8x128xf32, #tpu.memory_space<vmem>>, vector<1x8xf32>
    %cst = arith.constant dense<0.000000e+00> : vector<8x128xf32>
    %5 = tpu.matmul %1, %0, %cst {dimension_numbers = #tpu.dot_dimension_numbers<[1], [0], [0], [1], [0, 0, 1, 1], [], []>} : vector<8x8xf32>, vector<8x128xf32>, vector<8x128xf32> -> vector<8x128xf32>
    %6 = vector.broadcast %2 : vector<8x1xf32> to vector<8x128xf32>
    %7 = arith.addf %5, %6 : vector<8x128xf32>
    %cst_6 = arith.constant 5.000000e-01 : f32
    %8 = vector.broadcast %cst_6 : f32 to vector<8x128xf32>
    %9 = arith.mulf %8, %7 : vector<8x128xf32>
    %10 = math.tanh %9 : vector<8x128xf32>
    %cst_7 = arith.constant 1.000000e+00 : f32
    %11 = vector.broadcast %cst_7 : f32 to vector<8x128xf32>
    %12 = arith.addf %10, %11 : vector<8x128xf32>
    %cst_8 = arith.constant 5.000000e-01 : f32
    %13 = vector.broadcast %cst_8 : f32 to vector<8x128xf32>
    %14 = arith.mulf %13, %12 : vector<8x128xf32>
    %cst_9 = arith.constant dense<0.000000e+00> : vector<8x128xf32>
    %15 = tpu.matmul %3, %14, %cst_9 {dimension_numbers = #tpu.dot_dimension_numbers<[1], [0], [0], [1], [0, 0, 1, 1], [], []>} : vector<8x8xf32>, vector<8x128xf32>, vector<8x128xf32> -> vector<8x128xf32>
    %cst_10 = arith.constant 5.000000e-01 : f32
    %16 = vector.broadcast %cst_10 : f32 to vector<8x128xf32>
    %17 = arith.mulf %16, %15 : vector<8x128xf32>
    %18 = math.tanh %17 : vector<8x128xf32>
    %cst_11 = arith.constant 1.000000e+00 : f32
    %19 = vector.broadcast %cst_11 : f32 to vector<8x128xf32>
    %20 = arith.addf %18, %19 : vector<8x128xf32>
    %cst_12 = arith.constant 5.000000e-01 : f32
    %21 = vector.broadcast %cst_12 : f32 to vector<8x128xf32>
    %22 = arith.mulf %21, %20 : vector<8x128xf32>
    %cst_13 = arith.constant dense<0.000000e+00> : vector<1x128xf32>
    %23 = tpu.matmul %4, %22, %cst_13 {dimension_numbers = #tpu.dot_dimension_numbers<[1], [0], [0], [1], [0, 0, 1, 1], [], []>} : vector<1x8xf32>, vector<8x128xf32>, vector<1x128xf32> -> vector<1x128xf32>
    %cst_14 = arith.constant 5.000000e-01 : f32
    %24 = vector.broadcast %cst_14 : f32 to vector<1x128xf32>
    %25 = arith.mulf %24, %23 : vector<1x128xf32>
    %26 = math.tanh %25 : vector<1x128xf32>
    %cst_15 = arith.constant 1.000000e+00 : f32
    %27 = vector.broadcast %cst_15 : f32 to vector<1x128xf32>
    %28 = arith.addf %26, %27 : vector<1x128xf32>
    %cst_16 = arith.constant 5.000000e-01 : f32
    %29 = vector.broadcast %cst_16 : f32 to vector<1x128xf32>
    %30 = arith.mulf %29, %28 : vector<1x128xf32>
    %c0_17 = arith.constant 0 : index
    %c0_18 = arith.constant 0 : index
    %31 = vector.load %arg3[%c0_17, %c0_18] : memref<1x128xf32, #tpu.memory_space<vmem>>, vector<1x128xf32>
    tpu.vector_store %arg3[%c0_17, %c0_18], %30 {strides = array<i32>} : memref<1x128xf32, #tpu.memory_space<vmem>>, vector<1x128xf32>,
    return
  }
  func.func @transform_0(%arg0: i32) -> (i32, i32) {
    %c0_i32 = arith.constant 0 : i32
    %c0_i32_0 = arith.constant 0 : i32
    return %c0_i32, %arg0 : i32, i32
  }
  func.func @transform_1(%arg0: i32) -> (i32, i32) {
    %c0_i32 = arith.constant 0 : i32
    %c0_i32_0 = arith.constant 0 : i32
    %c0_i32_1 = arith.constant 0 : i32
    return %c0_i32, %c0_i32_0 : i32, i32
  }
  func.func @transform_2(%arg0: i32) -> (i32, i32) {
    %c0_i32 = arith.constant 0 : i32
    %c0_i32_0 = arith.constant 0 : i32
    return %c0_i32, %arg0 : i32, i32
  }
}

</mosaic_0001>

<llo_original>
// kernel: multi_dim_forward.1
$region0: #{multi_dim_forward.1}
  #allocation0 [shape = 'u32[]', space=smem, size = 0x4, offset = 0x4, fixed_abs, tag = 'smem constant byte address 0x4 - core index']
  #allocation1 [shape = 'u32[144,128]{1,0:T(1,128)}', space=vmem, size = 0x12000, scoped, tag = 'internal scratch']
  %s0 = inlined_call_operand.vmem [shape: f32[8,128], index: 0, kind: input, shape index: {}]
  %s1 = inlined_call_operand.vmem [shape: f32[8,128], index: 1, kind: input, shape index: {}]
  %s2 = inlined_call_operand.vmem [shape: f32[1,128], index: 2, kind: output, shape index: {}]
  %s3 = sld [smem:[#allocation0]]
  $region18: #{multi_dim_forward.1} parent=0
    _
  %s5 = ssub.s32 1, %s3
  %s6 = scalar_select 0, %s5, %s3
  // Predicated region
  $region2: #{multi_dim_forward.1} parent=0 // pred_check
    _
  $region3: #{multi_dim_forward.1} parent=0 // pred_check_branch
    %8 = sbr.rel (0) target = $region5
  $region4: #{multi_dim_forward.1} parent=0 // pred_region
    _
  $region5: #{multi_dim_forward.1} parent=0 // pred_fallthru
    _
  // Predicated region
  $region6: #{multi_dim_forward.1} parent=0 // pred_check
    _
  $region7: #{multi_dim_forward.1} parent=0 // pred_check_branch
    %10 = sbr.rel (0) target = $region9
  $region8: #{multi_dim_forward.1} parent=0 // pred_region
    _
  $region9: #{multi_dim_forward.1} parent=0 // pred_fallthru
    _
  %v11 = vld [vmem:[%s0] sm:$0xff]
  %v12 = vld [vmem:[%s1] sm:$0xff]
  %v13 = vld [vmem:[%s1] sm:$0x1]
  %15 = vset.pattern.permute.xlu0 24
  %16 = vperm.xlu0 %15, %v12
  %v17 = vpop.permute.xlu0 %16
  %vm19 = vcmask 64512
  %v20 = vsel %vm19, %v12, 0
  %22 = vmatprep.subr.mxu0 0.0
  %23 = vmatpush1.msra.mxu0 %v11
  %24 = vmatprep.subr.mxu0 0.0
  %25 = vmatpush1.msra.mxu0 0.0
  %26 = vmatprep.subr.mxu0 0.0
  %27 = vmatpush1.msra.mxu0 0.0
  %28 = vmatprep.subr.mxu0 0.0
  %29 = vmatpush1.msra.mxu0 0.0
  %30 = vmatprep.subr.mxu0 0.0
  %31 = vmatpush1.msra.mxu0 0.0
  %32 = vmatprep.subr.mxu0 0.0
  %33 = vmatpush1.msra.mxu0 0.0
  %34 = vmatprep.subr.mxu0 0.0
  %35 = vmatpush1.msra.mxu0 0.0
  %36 = vmatprep.subr.mxu0 0.0
  %37 = vmatpush1.msra.mxu0 0.0
  %38 = vmatprep.subr.mxu0 0.0
  %39 = vmatpush1.msra.mxu0 0.0
  %40 = vmatprep.subr.mxu0 0.0
  %41 = vmatpush1.msra.mxu0 0.0
  %42 = vmatprep.subr.mxu0 0.0
  %43 = vmatpush1.msra.mxu0 0.0
  %44 = vmatprep.subr.mxu0 0.0
  %45 = vmatpush1.msra.mxu0 0.0
  %46 = vmatprep.subr.mxu0 0.0
  %47 = vmatpush1.msra.mxu0 0.0
  %48 = vmatprep.subr.mxu0 0.0
  %49 = vmatpush1.msra.mxu0 0.0
  %50 = vmatprep.subr.mxu0 0.0
  %51 = vmatpush1.msra.mxu0 0.0
  %52 = vmatprep.subr.mxu0 0.0
  %53 = vmatpush1.msra.mxu0 0.0
  %54 = vmatprep.subr.mxu0 0.0
  %55 = vmatpush1.msra.mxu0 0.0
  %56 = vmatprep.subr.mxu0 0.0
  %57 = vmatpush1.msra.mxu0 0.0
  %58 = vmatprep.subr.mxu0 0.0
  %59 = vmatpush1.msra.mxu0 0.0
  %60 = vmatprep.subr.mxu0 0.0
  %61 = vmatpush1.msra.mxu0 0.0
  %62 = vmatprep.subr.mxu0 0.0
  %63 = vmatpush1.msra.mxu0 0.0
  %64 = vmatprep.subr.mxu0 0.0
  %65 = vmatpush1.msra.mxu0 0.0
  %66 = vmatprep.subr.mxu0 0.0
  %67 = vmatpush1.msra.mxu0 0.0
  %68 = vmatprep.subr.mxu0 0.0
  %69 = vmatpush1.msra.mxu0 0.0
  %70 = vmatprep.subr.mxu0 0.0
  %71 = vmatpush1.msra.mxu0 0.0
  %72 = vmatprep.subr.mxu0 0.0
  %73 = vmatpush1.msra.mxu0 0.0
  %74 = vmatprep.subr.mxu0 0.0
  %75 = vmatpush1.msra.mxu0 0.0
  %76 = vmatprep.subr.mxu0 0.0
  %77 = vmatpush1.msra.mxu0 0.0
  %78 = vmatprep.subr.mxu0 0.0
  %79 = vmatpush1.msra.mxu0 0.0
  %80 = vmatprep.subr.mxu0 0.0
  %81 = vmatpush1.msra.mxu0 0.0
  %82 = vmatprep.subr.mxu0 0.0
  %83 = vmatpush1.msra.mxu0 0.0
  %84 = vmatprep.subr.mxu0 0.0
  %85 = vmatpush1.msra.mxu0 0.0
  %86 = vmatprep.mubr.f32.mxu0 0.0
  %87 = vmatmul.mubr.f32.gmra.mrb[0].mxu0 %v20
  %v88 = vpop.f32.mrb[0].mxu0
  %v89 = vadd.f32 %v17, %v88
  %v90 = vpop.f32.mrb[0].mxu0
  %91 = vdwg.mxu0
  %v92 = vmul.f32 %v89, 0.5
  %v93 = vtanh.pop %v92
  %v94 = vadd.f32 %v93, 1.0
  %v95 = vmul.f32 %v94, 0.5
  %96 = vrot.lane.b32.xlu0 %v12, 120
  %v97 = vpop.permute.xlu0 %96
  %v98 = vsel %vm19, %v97, 0
  %100 = vmatprep.subr.mxu0 0.0
  %101 = vmatpush1.msra.mxu0 %v95
  %102 = vmatprep.subr.mxu0 0.0
  %103 = vmatpush1.msra.mxu0 0.0
  %104 = vmatprep.subr.mxu0 0.0
  %105 = vmatpush1.msra.mxu0 0.0
  %106 = vmatprep.subr.mxu0 0.0
  %107 = vmatpush1.msra.mxu0 0.0
  %108 = vmatprep.subr.mxu0 0.0
  %109 = vmatpush1.msra.mxu0 0.0
  %110 = vmatprep.subr.mxu0 0.0
  %111 = vmatpush1.msra.mxu0 0.0
  %112 = vmatprep.subr.mxu0 0.0
  %113 = vmatpush1.msra.mxu0 0.0
  %114 = vmatprep.subr.mxu0 0.0
  %115 = vmatpush1.msra.mxu0 0.0
  %116 = vmatprep.subr.mxu0 0.0
  %117 = vmatpush1.msra.mxu0 0.0
  %118 = vmatprep.subr.mxu0 0.0
  %119 = vmatpush1.msra.mxu0 0.0
  %120 = vmatprep.subr.mxu0 0.0
  %121 = vmatpush1.msra.mxu0 0.0
  %122 = vmatprep.subr.mxu0 0.0
  %123 = vmatpush1.msra.mxu0 0.0
  %124 = vmatprep.subr.mxu0 0.0
  %125 = vmatpush1.msra.mxu0 0.0
  %126 = vmatprep.subr.mxu0 0.0
  %127 = vmatpush1.msra.mxu0 0.0
  %128 = vmatprep.subr.mxu0 0.0
  %129 = vmatpush1.msra.mxu0 0.0
  %130 = vmatprep.subr.mxu0 0.0
  %131 = vmatpush1.msra.mxu0 0.0
  %132 = vmatprep.subr.mxu0 0.0
  %133 = vmatpush1.msra.mxu0 0.0
  %134 = vmatprep.subr.mxu0 0.0
  %135 = vmatpush1.msra.mxu0 0.0
  %136 = vmatprep.subr.mxu0 0.0
  %137 = vmatpush1.msra.mxu0 0.0
  %138 = vmatprep.subr.mxu0 0.0
  %139 = vmatpush1.msra.mxu0 0.0
  %140 = vmatprep.subr.mxu0 0.0
  %141 = vmatpush1.msra.mxu0 0.0
  %142 = vmatprep.subr.mxu0 0.0
  %143 = vmatpush1.msra.mxu0 0.0
  %144 = vmatprep.subr.mxu0 0.0
  %145 = vmatpush1.msra.mxu0 0.0
  %146 = vmatprep.subr.mxu0 0.0
  %147 = vmatpush1.msra.mxu0 0.0
  %148 = vmatprep.subr.mxu0 0.0
  %149 = vmatpush1.msra.mxu0 0.0
  %150 = vmatprep.subr.mxu0 0.0
  %151 = vmatpush1.msra.mxu0 0.0
  %152 = vmatprep.subr.mxu0 0.0
  %153 = vmatpush1.msra.mxu0 0.0
  %154 = vmatprep.subr.mxu0 0.0
  %155 = vmatpush1.msra.mxu0 0.0
  %156 = vmatprep.subr.mxu0 0.0
  %157 = vmatpush1.msra.mxu0 0.0
  %158 = vmatprep.subr.mxu0 0.0
  %159 = vmatpush1.msra.mxu0 0.0
  %160 = vmatprep.subr.mxu0 0.0
  %161 = vmatpush1.msra.mxu0 0.0
  %162 = vmatprep.subr.mxu0 0.0
  %163 = vmatpush1.msra.mxu0 0.0
  %164 = vmatprep.mubr.f32.mxu0 0.0
  %165 = vmatmul.mubr.f32.gmra.mrb[0].mxu0 %v98
  %v166 = vpop.f32.mrb[0].mxu0
  %v167 = vadd.f32 0.0, %v166
  %v168 = vpop.f32.mrb[0].mxu0
  %169 = vdwg.mxu0
  %v170 = vmul.f32 %v167, 0.5
  %v171 = vtanh.pop %v170
  %v172 = vadd.f32 %v171, 1.0
  %v173 = vmul.f32 %v172, 0.5
  %175 = vrot.lane.b32.xlu0 %v13, 112
  %v176 = vpop.permute.xlu0 %175
  %v177 = vsel %vm19, %v176, 0
  %179 = vmatprep.subr.mxu0 0.0
  %180 = vmatpush1.msra.mxu0 %v173
  %181 = vmatprep.subr.mxu0 0.0
  %182 = vmatpush1.msra.mxu0 0.0
  %183 = vmatprep.subr.mxu0 0.0
  %184 = vmatpush1.msra.mxu0 0.0
  %185 = vmatprep.subr.mxu0 0.0
  %186 = vmatpush1.msra.mxu0 0.0
  %187 = vmatprep.subr.mxu0 0.0
  %188 = vmatpush1.msra.mxu0 0.0
  %189 = vmatprep.subr.mxu0 0.0
  %190 = vmatpush1.msra.mxu0 0.0
  %191 = vmatprep.subr.mxu0 0.0
  %192 = vmatpush1.msra.mxu0 0.0
  %193 = vmatprep.subr.mxu0 0.0
  %194 = vmatpush1.msra.mxu0 0.0
  %195 = vmatprep.subr.mxu0 0.0
  %196 = vmatpush1.msra.mxu0 0.0
  %197 = vmatprep.subr.mxu0 0.0
  %198 = vmatpush1.msra.mxu0 0.0
  %199 = vmatprep.subr.mxu0 0.0
  %200 = vmatpush1.msra.mxu0 0.0
  %201 = vmatprep.subr.mxu0 0.0
  %202 = vmatpush1.msra.mxu0 0.0
  %203 = vmatprep.subr.mxu0 0.0
  %204 = vmatpush1.msra.mxu0 0.0
  %205 = vmatprep.subr.mxu0 0.0
  %206 = vmatpush1.msra.mxu0 0.0
  %207 = vmatprep.subr.mxu0 0.0
  %208 = vmatpush1.msra.mxu0 0.0
  %209 = vmatprep.subr.mxu0 0.0
  %210 = vmatpush1.msra.mxu0 0.0
  %211 = vmatprep.subr.mxu0 0.0
  %212 = vmatpush1.msra.mxu0 0.0
  %213 = vmatprep.subr.mxu0 0.0
  %214 = vmatpush1.msra.mxu0 0.0
  %215 = vmatprep.subr.mxu0 0.0
  %216 = vmatpush1.msra.mxu0 0.0
  %217 = vmatprep.subr.mxu0 0.0
  %218 = vmatpush1.msra.mxu0 0.0
  %219 = vmatprep.subr.mxu0 0.0
  %220 = vmatpush1.msra.mxu0 0.0
  %221 = vmatprep.subr.mxu0 0.0
  %222 = vmatpush1.msra.mxu0 0.0
  %223 = vmatprep.subr.mxu0 0.0
  %224 = vmatpush1.msra.mxu0 0.0
  %225 = vmatprep.subr.mxu0 0.0
  %226 = vmatpush1.msra.mxu0 0.0
  %227 = vmatprep.subr.mxu0 0.0
  %228 = vmatpush1.msra.mxu0 0.0
  %229 = vmatprep.subr.mxu0 0.0
  %230 = vmatpush1.msra.mxu0 0.0
  %231 = vmatprep.subr.mxu0 0.0
  %232 = vmatpush1.msra.mxu0 0.0
  %233 = vmatprep.subr.mxu0 0.0
  %234 = vmatpush1.msra.mxu0 0.0
  %235 = vmatprep.subr.mxu0 0.0
  %236 = vmatpush1.msra.mxu0 0.0
  %237 = vmatprep.subr.mxu0 0.0
  %238 = vmatpush1.msra.mxu0 0.0
  %239 = vmatprep.subr.mxu0 0.0
  %240 = vmatpush1.msra.mxu0 0.0
  %241 = vmatprep.subr.mxu0 0.0
  %242 = vmatpush1.msra.mxu0 0.0
  %243 = vmatprep.mubr.f32.mxu0 0.0
  %244 = vmatmul.mubr.f32.gmra.mrb[0].mxu0 %v177
  %v245 = vpop.f32.mrb[0].mxu0
  %v246 = vadd.f32 0.0, %v245
  %v247 = vpop.f32.mrb[0].mxu0
  %248 = vdwg.mxu0
  %v249 = vmul.f32 %v246, 0.5
  %v250 = vtanh.pop %v249
  %v251 = vadd.f32 %v250, 1.0
  %v252 = vmul.f32 %v251, 0.5
  %253 = vst [vmem:[%s2] sm:$0x1] %v252
  // Predicated region
  $region10: #{multi_dim_forward.1} parent=0 // pred_check
    _
  $region11: #{multi_dim_forward.1} parent=0 // pred_check_branch
    %255 = sbr.rel (0) target = $region13
  $region12: #{multi_dim_forward.1} parent=0 // pred_region
    _
  $region13: #{multi_dim_forward.1} parent=0 // pred_fallthru
    _
  // Predicated region
  $region14: #{multi_dim_forward.1} parent=0 // pred_check
    _
  $region15: #{multi_dim_forward.1} parent=0 // pred_check_branch
    %257 = sbr.rel (0) target = $region17
  $region16: #{multi_dim_forward.1} parent=0 // pred_region
    _
  $region17: #{multi_dim_forward.1} parent=0 // pred_fallthru
    _

</llo_original>
